<compile_context>
chip_gen: v7x
topology: tpu7x:2x2x1
jax: 0.10.0
libtpu: 0.0.40
codegen_flags: <defaults>
</compile_context>

<pallas_src>
import functools

import jax
import jax.numpy as jnp
from jax.experimental import pallas as pl
from jax.experimental.pallas import tpu as pltpu

LANES = 128                   # lane width of one vreg / MXU tile
BIAS_LANE = LANES - 1         # constant-1 row used to fold biases into W
NUM_LAYERS = 6
COMPUTE_DTYPE = jnp.bfloat16  # MXU operand dtype (accumulation stays f32)
MAX_BLOCK_B = 512             # batch-tile cap (vreg-pressure guidance); sweepable


def _round_up(x, m):
    return ((x + m - 1) // m) * m


# ----------------------------- Pallas kernel --------------------------------

def _q_mlp_kernel(xT_ref, w_ref, out_ref):
    """6-layer MLP on one transposed batch tile.

    xT_ref : (128, block_b) bf16 activations; row BIAS_LANE == 1.0 (real cols),
             padded batch columns are all-zero.
    w_ref  : (6, 128, 128)  bf16 packed transposed-augmented weights
             (W^T in the top-left corner, bias in column BIAS_LANE,
              W[BIAS_LANE, BIAS_LANE] == 1 so the constant row propagates).
    out_ref: (1, block_b) f32 lane-dense Q values (one per batch column).
    """
    h = xT_ref[...]
    for layer in range(NUM_LAYERS - 1):
        z = jnp.dot(w_ref[layer], h, preferred_element_type=jnp.float32)
        # ReLU keeps the constant-1 row and zero pad rows/cols exact.
        h = jnp.maximum(z, 0.0).astype(COMPUTE_DTYPE)
    zq = jnp.dot(w_ref[NUM_LAYERS - 1], h, preferred_element_type=jnp.float32)
    out_ref[...] = zq[0:1, :]          # only output feature 0 (the Q value)


# ----------------------- one-time parameter packing --------------------------

def pack_q_params(params):
    """Pack the 6 (W, b) pairs into a single (6, 128, 128) bf16 stack.

    Stored TRANSPOSED + augmented: row o holds W[:, o], column BIAS_LANE holds
    b[o], and [BIAS_LANE, BIAS_LANE] = 1 so the constant-1 input row propagates
    through every layer (augmented-matrix bias trick).  Zero padding is exact
    for linear layers + ReLU.  NOTE: this relies on ReLU(1)=1 and ReLU(0)=0; a
    non-monotone activation or a hidden width of 127 would corrupt lane 127.
    Call once; keep the result as a persistent device array.
    """
    assert len(params) == NUM_LAYERS
    widths = [params[0][0].shape[0]] + [w.shape[1] for (w, _) in params]
    assert max(widths) <= BIAS_LANE, "hidden widths must fit in one 128-lane tile"
    wt = jnp.zeros((NUM_LAYERS, LANES, LANES), jnp.float32)
    for i, (w, b) in enumerate(params):
        fan_in, fan_out = w.shape
        wt = wt.at[i, :fan_out, :fan_in].set(w.T.astype(jnp.float32))
        wt = wt.at[i, :fan_out, BIAS_LANE].set(b.astype(jnp.float32))
        wt = wt.at[i, BIAS_LANE, BIAS_LANE].set(1.0)
    return wt.astype(COMPUTE_DTYPE)


# --------------------------- batch-tile selection -----------------------------

def _choose_tiling(B):
    """Return (block_b, num_blocks), block_b a multiple of 128.

    v5e/v6e (single TensorCore): one big tile -> grid=1, no per-step overhead.
    v7x (2 TensorCores): >=2 grid steps so dimension_semantics=("parallel",)
    can shard the batch tiles across both cores.
    """
    try:
        kind = jax.devices()[0].device_kind.lower()
    except Exception:  # pragma: no cover - defensive
        kind = ""
    dual_tc = ("v7" in kind) or ("7x" in kind)
    b_min = _round_up(max(B, 1), LANES)
    if dual_tc:
        num_blocks = max(2, pl.cdiv(b_min, MAX_BLOCK_B))
        block_b = max(LANES, _round_up(pl.cdiv(b_min, num_blocks), LANES))
    else:
        block_b = min(b_min, MAX_BLOCK_B)
        num_blocks = pl.cdiv(b_min, block_b)
    num_blocks = max(num_blocks, pl.cdiv(b_min, block_b))
    return block_b, num_blocks


# --------------------------------- wrapper -----------------------------------

@functools.partial(jax.jit, static_argnames=("block_b", "num_blocks"))
def _q_controller_mlp_tiled(x, w_stack, *, block_b, num_blocks):
    """Batched QController q_layers forward (fixed tiling).

    x:       (B, input_size) f32 batch of combined feature vectors.
    w_stack: (6, 128, 128) bf16 packed weights from pack_q_params().
    Returns: (B, 1) f32 Q-values.
    """
    B, F = x.shape
    assert F <= BIAS_LANE, "input_size must fit in one 128-lane tile"
    assert block_b % LANES == 0, "block_b must be a multiple of 128 (lane-dense out)"
    B_pad = block_b * num_blocks
    assert B_pad >= B

    # Transposed, bias-augmented input built directly in bf16 (no f32 slab):
    #   rows 0..F-1 : features, rows F..126 : zero pad, row 127 : constant 1.
    xT = jnp.concatenate(
        [x.T.astype(COMPUTE_DTYPE),
         jnp.zeros((BIAS_LANE - F, B), COMPUTE_DTYPE),
         jnp.ones((1, B), COMPUTE_DTYPE)],
        axis=0)                                            # (128, B)
    if B_pad != B:
        # Padded batch columns are all-zero (incl. bias row) => Q == 0 exactly;
        # they are sliced off below and are safe even under later reductions.
        xT = jnp.concatenate(
            [xT, jnp.zeros((LANES, B_pad - B), COMPUTE_DTYPE)], axis=1)

    out = pl.pallas_call(
        _q_mlp_kernel,
        out_shape=jax.ShapeDtypeStruct((1, B_pad), jnp.float32),
        grid=(num_blocks,),
        in_specs=[
            pl.BlockSpec((LANES, block_b), lambda i: (0, i)),
            # Constant index_map: weights DMA'd once in the prologue, never
            # re-fetched across grid steps (packed stack is only ~196 KB).
            pl.BlockSpec((NUM_LAYERS, LANES, LANES), lambda i: (0, 0, 0)),
        ],
        out_specs=pl.BlockSpec((1, block_b), lambda i: (0, i)),
        compiler_params=pltpu.CompilerParams(
            dimension_semantics=("parallel",)),
    )(xT, w_stack)
    return out[0, :B].reshape(B, 1)


def q_controller_mlp(x, w_stack, *, block_b=None):
    """Batched QController q_layers forward with per-chip tile selection."""
    B = x.shape[0]
    if block_b is None:
        block_b, num_blocks = _choose_tiling(B)
    else:
        assert block_b % LANES == 0
        num_blocks = max(1, pl.cdiv(B, block_b))
    return _q_controller_mlp_tiled(x, w_stack, block_b=block_b,
                                   num_blocks=num_blocks)


# --------------------------- parameter construction --------------------------

def make_q_layers_params(key, input_size):
    """Deterministic init matching the nn.Sequential layer shapes (PyTorch-style
    uniform(-1/sqrt(fan_in), 1/sqrt(fan_in))).  W stored as (in, out)."""
    widths = [input_size, 2 * input_size, int(1.4 * input_size), input_size,
              int(0.5 * input_size), int(1.0 / 16 * input_size), 1]
    params = []
    for i in range(NUM_LAYERS):
        fan_in, fan_out = widths[i], widths[i + 1]
        key, kw, kb = jax.random.split(key, 3)
        bound = 1.0 / (fan_in ** 0.5)
        w = jax.random.uniform(kw, (fan_in, fan_out), jnp.float32, -bound, bound)
        b = jax.random.uniform(kb, (fan_out,), jnp.float32, -bound, bound)
        params.append((w, b))
    return params


# ------------------------------- references ----------------------------------

def reference_mlp_f32(x, params):
    """Full-f32 reference matching the PyTorch module semantics exactly."""
    h = x
    for i, (w, b) in enumerate(params):
        h = h @ w + b
        if i < len(params) - 1:
            h = jnp.maximum(h, 0.0)
    return h


def reference_mlp_bf16(x, params):
    """Same math at the kernel's operand precision (bf16 ops, f32 accumulate)."""
    q = lambda a: a.astype(COMPUTE_DTYPE).astype(jnp.float32)
    h = q(x)
    for i, (w, b) in enumerate(params):
        h = h @ q(w) + q(b)
        if i < len(params) - 1:
            h = q(jnp.maximum(h, 0.0))
    return h


# ---------------------------------- main -------------------------------------

if __name__ == "__main__":
    observation_tensor_size = 16
    theorem_embedding_size = 8
    entity_embedding_size = 4
    maximum_operand_size = 5
    input_size = (observation_tensor_size
                  + theorem_embedding_size
                  + (1 + maximum_operand_size) * entity_embedding_size)  # = 48

    key = jax.random.PRNGKey(0)
    key, k_state, k_thm, k_ents, k_cand, k_params = jax.random.split(key, 6)

    # Simulated encoder outputs.
    # TODO(synk): encoder.encode_observation/encode_theorem/encode_entity are
    # external recursive modules; simulated here as fixed embedding vectors.
    state_tensor = jax.random.normal(k_state, (observation_tensor_size,), jnp.float32)
    theorem_tensor = jax.random.normal(k_thm, (theorem_embedding_size,), jnp.float32)
    num_entities_taken = 3
    entities_taken = [jax.random.normal(jax.random.fold_in(k_ents, i),
                                        (entity_embedding_size,), jnp.float32)
                      for i in range(num_entities_taken)]
    entities_taken += [jnp.zeros((entity_embedding_size,), jnp.float32)
                       ] * (maximum_operand_size - num_entities_taken)

    # Batch of B candidate actions (entities) scored against the same state /
    # theorem / operands: each row mirrors the module's
    # torch.cat([state, theorem, *operand_slots, entity]).view(1, -1).
    B = 128
    candidate_entities = jax.random.normal(k_cand, (B, entity_embedding_size),
                                           jnp.float32)
    prefix = jnp.concatenate([state_tensor, theorem_tensor] + entities_taken, axis=0)
    combined = jnp.concatenate(
        [jnp.broadcast_to(prefix, (B, prefix.shape[0])), candidate_entities], axis=1)
    assert combined.shape[1] == input_size

    params = make_q_layers_params(k_params, input_size)
    w_stack = pack_q_params(params)        # one-time pad + transpose + pack + bf16

    # Pallas kernel result (tile size auto-selected per chip generation).
    q_vals = q_controller_mlp(combined, w_stack)
    q_vals = jax.block_until_ready(q_vals)
    assert q_vals.shape == (B, 1)

    # Correctness: exact (up to f32 accumulation order) vs bf16-precision ref ...
    ref_bf16 = reference_mlp_bf16(combined, params)
    assert jnp.allclose(q_vals, ref_bf16, atol=2e-3, rtol=2e-3), (
        "max |diff| vs bf16 ref:", float(jnp.max(jnp.abs(q_vals - ref_bf16))))
    # ... and close to the full-f32 module semantics (bf16 quantization error).
    ref_f32 = reference_mlp_f32(combined, params)
    assert jnp.allclose(q_vals, ref_f32, atol=1e-1, rtol=1e-1), (
        "max |diff| vs f32 ref:", float(jnp.max(jnp.abs(q_vals - ref_f32))))

    print("KERNEL_OK")
</pallas_src>

<mosaic_0001>
module attributes {stable_mosaic.version = 11 : i64} {
  func.func @_q_mlp_kernel(%arg0: i32, %arg1: memref<128x128xbf16, #tpu.memory_space<vmem>>, %arg2: memref<6x128x128xbf16, #tpu.memory_space<vmem>>, %arg3: memref<1x128xf32, #tpu.memory_space<vmem>>) attributes {dimension_semantics = [#tpu.dimension_semantics<parallel>], iteration_bounds = array<i64: 1>, scalar_prefetch = 0 : i64, scratch_operands = 0 : i64, tpu.core_type = #tpu.core_type<tc>, window_params = [{transform_indices = @transform_0, window_bounds = array<i64: 128, 128>}, {pipeline_mode = #tpu.pipeline_mode<synchronous>, transform_indices = @transform_1, window_bounds = array<i64: 6, 128, 128>}, {transform_indices = @transform_2, window_bounds = array<i64: 1, 128>}]} {
    %c0 = arith.constant 0 : index
    %c0_0 = arith.constant 0 : index
    %0 = vector.load %arg1[%c0, %c0_0] : memref<128x128xbf16, #tpu.memory_space<vmem>>, vector<128x128xbf16>
    %c0_1 = arith.constant 0 : index
    %c0_2 = arith.constant 0 : index
    %c0_3 = arith.constant 0 : index
    %1 = vector.load %arg2[%c0_1, %c0_2, %c0_3] : memref<6x128x128xbf16, #tpu.memory_space<vmem>>, vector<1x128x128xbf16>
    %2 = vector.shape_cast %1 : vector<1x128x128xbf16> to vector<128x128xbf16>
    %cst = arith.constant dense<0.000000e+00> : vector<128x128xf32>
    %3 = tpu.matmul %2, %0, %cst {dimension_numbers = #tpu.dot_dimension_numbers<[1], [0], [0], [1], [0, 0, 1, 1], [], []>} : vector<128x128xbf16>, vector<128x128xbf16>, vector<128x128xf32> -> vector<128x128xf32>
    %cst_4 = arith.constant 0.000000e+00 : f32
    %4 = vector.broadcast %cst_4 : f32 to vector<128x128xf32>
    %5 = arith.maximumf %3, %4 : vector<128x128xf32>
    %6 = arith.truncf %5 : vector<128x128xf32> to vector<128x128xbf16>
    %c1 = arith.constant 1 : index
    %c0_5 = arith.constant 0 : index
    %c0_6 = arith.constant 0 : index
    %7 = vector.load %arg2[%c1, %c0_5, %c0_6] : memref<6x128x128xbf16, #tpu.memory_space<vmem>>, vector<1x128x128xbf16>
    %8 = vector.shape_cast %7 : vector<1x128x128xbf16> to vector<128x128xbf16>
    %cst_7 = arith.constant dense<0.000000e+00> : vector<128x128xf32>
    %9 = tpu.matmul %8, %6, %cst_7 {dimension_numbers = #tpu.dot_dimension_numbers<[1], [0], [0], [1], [0, 0, 1, 1], [], []>} : vector<128x128xbf16>, vector<128x128xbf16>, vector<128x128xf32> -> vector<128x128xf32>
    %cst_8 = arith.constant 0.000000e+00 : f32
    %10 = vector.broadcast %cst_8 : f32 to vector<128x128xf32>
    %11 = arith.maximumf %9, %10 : vector<128x128xf32>
    %12 = arith.truncf %11 : vector<128x128xf32> to vector<128x128xbf16>
    %c2 = arith.constant 2 : index
    %c0_9 = arith.constant 0 : index
    %c0_10 = arith.constant 0 : index
    %13 = vector.load %arg2[%c2, %c0_9, %c0_10] : memref<6x128x128xbf16, #tpu.memory_space<vmem>>, vector<1x128x128xbf16>
    %14 = vector.shape_cast %13 : vector<1x128x128xbf16> to vector<128x128xbf16>
    %cst_11 = arith.constant dense<0.000000e+00> : vector<128x128xf32>
    %15 = tpu.matmul %14, %12, %cst_11 {dimension_numbers = #tpu.dot_dimension_numbers<[1], [0], [0], [1], [0, 0, 1, 1], [], []>} : vector<128x128xbf16>, vector<128x128xbf16>, vector<128x128xf32> -> vector<128x128xf32>
    %cst_12 = arith.constant 0.000000e+00 : f32
    %16 = vector.broadcast %cst_12 : f32 to vector<128x128xf32>
    %17 = arith.maximumf %15, %16 : vector<128x128xf32>
    %18 = arith.truncf %17 : vector<128x128xf32> to vector<128x128xbf16>
    %c3 = arith.constant 3 : index
    %c0_13 = arith.constant 0 : index
    %c0_14 = arith.constant 0 : index
    %19 = vector.load %arg2[%c3, %c0_13, %c0_14] : memref<6x128x128xbf16, #tpu.memory_space<vmem>>, vector<1x128x128xbf16>
    %20 = vector.shape_cast %19 : vector<1x128x128xbf16> to vector<128x128xbf16>
    %cst_15 = arith.constant dense<0.000000e+00> : vector<128x128xf32>
    %21 = tpu.matmul %20, %18, %cst_15 {dimension_numbers = #tpu.dot_dimension_numbers<[1], [0], [0], [1], [0, 0, 1, 1], [], []>} : vector<128x128xbf16>, vector<128x128xbf16>, vector<128x128xf32> -> vector<128x128xf32>
    %cst_16 = arith.constant 0.000000e+00 : f32
    %22 = vector.broadcast %cst_16 : f32 to vector<128x128xf32>
    %23 = arith.maximumf %21, %22 : vector<128x128xf32>
    %24 = arith.truncf %23 : vector<128x128xf32> to vector<128x128xbf16>
    %c4 = arith.constant 4 : index
    %c0_17 = arith.constant 0 : index
    %c0_18 = arith.constant 0 : index
    %25 = vector.load %arg2[%c4, %c0_17, %c0_18] : memref<6x128x128xbf16, #tpu.memory_space<vmem>>, vector<1x128x128xbf16>
    %26 = vector.shape_cast %25 : vector<1x128x128xbf16> to vector<128x128xbf16>
    %cst_19 = arith.constant dense<0.000000e+00> : vector<128x128xf32>
    %27 = tpu.matmul %26, %24, %cst_19 {dimension_numbers = #tpu.dot_dimension_numbers<[1], [0], [0], [1], [0, 0, 1, 1], [], []>} : vector<128x128xbf16>, vector<128x128xbf16>, vector<128x128xf32> -> vector<128x128xf32>
    %cst_20 = arith.constant 0.000000e+00 : f32
    %28 = vector.broadcast %cst_20 : f32 to vector<128x128xf32>
    %29 = arith.maximumf %27, %28 : vector<128x128xf32>
    %30 = arith.truncf %29 : vector<128x128xf32> to vector<128x128xbf16>
    %c5 = arith.constant 5 : index
    %c0_21 = arith.constant 0 : index
    %c0_22 = arith.constant 0 : index
    %31 = vector.load %arg2[%c5, %c0_21, %c0_22] : memref<6x128x128xbf16, #tpu.memory_space<vmem>>, vector<1x128x128xbf16>
    %32 = vector.shape_cast %31 : vector<1x128x128xbf16> to vector<128x128xbf16>
    %cst_23 = arith.constant dense<0.000000e+00> : vector<128x128xf32>
    %33 = tpu.matmul %32, %30, %cst_23 {dimension_numbers = #tpu.dot_dimension_numbers<[1], [0], [0], [1], [0, 0, 1, 1], [], []>} : vector<128x128xbf16>, vector<128x128xbf16>, vector<128x128xf32> -> vector<128x128xf32>
    %34 = vector.extract_strided_slice %33 {offsets = [0, 0], sizes = [1, 128], strides = [1, 1]} : vector<128x128xf32> to vector<1x128xf32>
    %c0_24 = arith.constant 0 : index
    %c0_25 = arith.constant 0 : index
    %35 = vector.load %arg3[%c0_24, %c0_25] : memref<1x128xf32, #tpu.memory_space<vmem>>, vector<1x128xf32>
    tpu.vector_store %arg3[%c0_24, %c0_25], %34 {strides = array<i32>} : memref<1x128xf32, #tpu.memory_space<vmem>>, vector<1x128xf32>,
    return
  }
  func.func @transform_0(%arg0: i32) -> (i32, i32) {
    %c0_i32 = arith.constant 0 : i32
    %c0_i32_0 = arith.constant 0 : i32
    return %c0_i32, %arg0 : i32, i32
  }
  func.func @transform_1(%arg0: i32) -> (i32, i32, i32) {
    %c0_i32 = arith.constant 0 : i32
    %c0_i32_0 = arith.constant 0 : i32
    %c0_i32_1 = arith.constant 0 : i32
    %c0_i32_2 = arith.constant 0 : i32
    return %c0_i32, %c0_i32_0, %c0_i32_1 : i32, i32, i32
  }
  func.func @transform_2(%arg0: i32) -> (i32, i32) {
    %c0_i32 = arith.constant 0 : i32
    %c0_i32_0 = arith.constant 0 : i32
    return %c0_i32, %arg0 : i32, i32
  }
}

</mosaic_0001>

<llo_original>
// kernel: _q_controller_mlp_tiled.1
$region0: #{_q_controller_mlp_tiled.1}
  #allocation0 [shape = 'u32[]', space=smem, size = 0x4, offset = 0x4, fixed_abs, tag = 'smem constant byte address 0x4 - core index']
  #allocation1 [shape = 'u32[144,128]{1,0:T(1,128)}', space=vmem, size = 0x12000, scoped, tag = 'internal scratch']
  %s0 = inlined_call_operand.vmem [shape: bf16[128,128], index: 0, kind: input, shape index: {}]
  %s1 = inlined_call_operand.hbm [shape: bf16[6,128,128], index: 1, kind: input, shape index: {}]
  %s2 = inlined_call_operand.hbm [shape: f32[1,128], index: 2, kind: output, shape index: {}]
  %s3 = sld [smem:[#allocation0]]
  $region22: #{_q_controller_mlp_tiled.1} parent=0
    _
  %s5 = ssub.s32 1, %s3
  %s6 = scalar_select 0, %s5, %s3
  $region1: #{_q_controller_mlp_tiled.1} parent=0
    #allocation2 [shape = 'u8[196608]{0}', space=vmem, size = 0x30000, scoped, tag = 'input window, operand 1, single buffered']
    #allocation3 [shape = 's32[1]{0}', space=sflag, size = 0x4, scoped, tag = 'scoped memory for _q_controller_mlp_tiled.1']
    #allocation4 [shape = 's32[1]{0}', space=sflag, size = 0x4, scoped, tag = 'scoped memory for _q_controller_mlp_tiled.1']
    #allocation5 [shape = 'u8[512]{0}', space=vmem, size = 0x400, scoped, tag = 'output window, operand 0, single buffered']
    %7 = vsyncpa [#allocation3], 0
    %8 = vsyncpa [#allocation4], 0
    // Predicated region
    $region2: #{_q_controller_mlp_tiled.1} parent=1 // pred_check
      _
    $region3: #{_q_controller_mlp_tiled.1} parent=1 // pred_check_branch
      %10 = sbr.rel (0) target = $region5
    $region4: #{_q_controller_mlp_tiled.1} parent=1 // pred_region
      _
    $region5: #{_q_controller_mlp_tiled.1} parent=1 // pred_fallthru
      _
    // Predicated region
    $region6: #{_q_controller_mlp_tiled.1} parent=1 // pred_check
      _
    $region7: #{_q_controller_mlp_tiled.1} parent=1 // pred_check_branch
      %12 = sbr.rel (0) target = $region9
    $region8: #{_q_controller_mlp_tiled.1} parent=1 // pred_region
      %s14 = ssub.s32 6144, 6144
      %15 = vsyncadd [#allocation3], %s14
      %s16 = sshll.u32 [#allocation2], 4
      %s17 = int_to_ptr.vmem [resolvable:$true] %s16
      %22 = dma.hbm_to_vmem [thread:$0]  %s1, 6144, %s17, [#allocation3], 64, 64, 4
    $region9: #{_q_controller_mlp_tiled.1} parent=1 // pred_fallthru
      _
    // Predicated region
    $region10: #{_q_controller_mlp_tiled.1} parent=1 // pred_check
      _
    $region11: #{_q_controller_mlp_tiled.1} parent=1 // pred_check_branch
      %24 = sbr.rel (0) target = $region13
    $region12: #{_q_controller_mlp_tiled.1} parent=1 // pred_region
      %25 = dma.done [#allocation3], 6144
    $region13: #{_q_controller_mlp_tiled.1} parent=1 // pred_fallthru
      _
    %v27 = vld [vmem:[%s0] sm:$0xf]
    %v28 = vld [vmem:[%s0 + $0x4] sm:$0xf]
    %v29 = vld [vmem:[%s0 + $0x8] sm:$0xf]
    %v30 = vld [vmem:[%s0 + $0xc] sm:$0xf]
    %v31 = vld [vmem:[%s0 + $0x10] sm:$0xf]
    %v32 = vld [vmem:[%s0 + $0x14] sm:$0xf]
    %v33 = vld [vmem:[%s0 + $0x18] sm:$0xf]
    %v34 = vld [vmem:[%s0 + $0x1c] sm:$0xf]
    %v35 = vld [vmem:[%s0 + $0x20] sm:$0xf]
    %v36 = vld [vmem:[%s0 + $0x24] sm:$0xf]
    %v37 = vld [vmem:[%s0 + $0x28] sm:$0xf]
    %v38 = vld [vmem:[%s0 + $0x2c] sm:$0xf]
    %v39 = vld [vmem:[%s0 + $0x30] sm:$0xf]
    %v40 = vld [vmem:[%s0 + $0x34] sm:$0xf]
    %v41 = vld [vmem:[%s0 + $0x38] sm:$0xf]
    %v42 = vld [vmem:[%s0 + $0x3c] sm:$0xf]
    %v43 = vld [vmem:[#allocation2] sm:$0xf]
    %v44 = vld [vmem:[#allocation2 + $0x4] sm:$0xf]
    %v45 = vld [vmem:[#allocation2 + $0x8] sm:$0xf]
    %v46 = vld [vmem:[#allocation2 + $0xc] sm:$0xf]
    %v47 = vld [vmem:[#allocation2 + $0x10] sm:$0xf]
    %v48 = vld [vmem:[#allocation2 + $0x14] sm:$0xf]
    %v49 = vld [vmem:[#allocation2 + $0x18] sm:$0xf]
    %v50 = vld [vmem:[#allocation2 + $0x1c] sm:$0xf]
    %v51 = vld [vmem:[#allocation2 + $0x20] sm:$0xf]
    %v52 = vld [vmem:[#allocation2 + $0x24] sm:$0xf]
    %v53 = vld [vmem:[#allocation2 + $0x28] sm:$0xf]
    %v54 = vld [vmem:[#allocation2 + $0x2c] sm:$0xf]
    %v55 = vld [vmem:[#allocation2 + $0x30] sm:$0xf]
    %v56 = vld [vmem:[#allocation2 + $0x34] sm:$0xf]
    %v57 = vld [vmem:[#allocation2 + $0x38] sm:$0xf]
    %v58 = vld [vmem:[#allocation2 + $0x3c] sm:$0xf]
    %v75 = vunpack.c.l.b16 %v43
    %v76 = vunpack.c.l.b16 %v44
    %v77 = vunpack.c.l.b16 %v45
    %v78 = vunpack.c.l.b16 %v46
    %v79 = vunpack.c.l.b16 %v47
    %v80 = vunpack.c.l.b16 %v48
    %v81 = vunpack.c.l.b16 %v49
    %v82 = vunpack.c.l.b16 %v50
    %v83 = vunpack.c.l.b16 %v51
    %v84 = vunpack.c.l.b16 %v52
    %v85 = vunpack.c.l.b16 %v53
    %v86 = vunpack.c.l.b16 %v54
    %v87 = vunpack.c.l.b16 %v55
    %v88 = vunpack.c.l.b16 %v56
    %v89 = vunpack.c.l.b16 %v57
    %v90 = vunpack.c.l.b16 %v58
    %v91 = vpack.c.b16 %v76, %v75
    %v92 = vpack.c.b16 %v78, %v77
    %v93 = vpack.c.b16 %v80, %v79
    %v94 = vpack.c.b16 %v82, %v81
    %v95 = vpack.c.b16 %v84, %v83
    %v96 = vpack.c.b16 %v86, %v85
    %v97 = vpack.c.b16 %v88, %v87
    %v98 = vpack.c.b16 %v90, %v89
    %v123 = vunpack.c.l.b16 %v27
    %v124 = vunpack.c.l.b16 %v28
    %v125 = vunpack.c.l.b16 %v29
    %v126 = vunpack.c.l.b16 %v30
    %v127 = vunpack.c.l.b16 %v31
    %v128 = vunpack.c.l.b16 %v32
    %v129 = vunpack.c.l.b16 %v33
    %v130 = vunpack.c.l.b16 %v34
    %v131 = vunpack.c.l.b16 %v35
    %v132 = vunpack.c.l.b16 %v36
    %v133 = vunpack.c.l.b16 %v37
    %v134 = vunpack.c.l.b16 %v38
    %v135 = vunpack.c.l.b16 %v39
    %v136 = vunpack.c.l.b16 %v40
    %v137 = vunpack.c.l.b16 %v41
    %v138 = vunpack.c.l.b16 %v42
    %v139 = vpack.c.b16 %v124, %v123
    %v140 = vpack.c.b16 %v126, %v125
    %v141 = vpack.c.b16 %v128, %v127
    %v142 = vpack.c.b16 %v130, %v129
    %v143 = vpack.c.b16 %v132, %v131
    %v144 = vpack.c.b16 %v134, %v133
    %v145 = vpack.c.b16 %v136, %v135
    %v146 = vpack.c.b16 %v138, %v137
    %155 = vmatprep.subr.bf16.mxu0 0
    %156 = vmatpush1.bf16.msra.mxu0 %v139
    %157 = vmatprep.subr.bf16.mxu0 0
    %158 = vmatpush1.bf16.msra.mxu0 %v140
    %159 = vmatprep.subr.bf16.mxu0 0
    %160 = vmatpush1.bf16.msra.mxu0 %v141
    %161 = vmatprep.subr.bf16.mxu0 0
    %162 = vmatpush1.bf16.msra.mxu0 %v142
    %163 = vmatprep.subr.bf16.mxu0 0
    %164 = vmatpush1.bf16.msra.mxu0 %v143
    %165 = vmatprep.subr.bf16.mxu0 0
    %166 = vmatpush1.bf16.msra.mxu0 %v144
    %167 = vmatprep.subr.bf16.mxu0 0
    %168 = vmatpush1.bf16.msra.mxu0 %v145
    %169 = vmatprep.subr.bf16.mxu0 0
    %170 = vmatpush1.bf16.msra.mxu0 %v146
    %171 = vmatprep.subr.bf16.mxu0 0
    %172 = vmatpush1.bf16.msra.mxu0 0
    %173 = vmatprep.subr.bf16.mxu0 0
    %174 = vmatpush1.bf16.msra.mxu0 0
    %175 = vmatprep.subr.bf16.mxu0 0
    %176 = vmatpush1.bf16.msra.mxu0 0
    %177 = vmatprep.subr.bf16.mxu0 0
    %178 = vmatpush1.bf16.msra.mxu0 0
    %179 = vmatprep.subr.bf16.mxu0 0
    %180 = vmatpush1.bf16.msra.mxu0 0
    %181 = vmatprep.subr.bf16.mxu0 0
    %182 = vmatpush1.bf16.msra.mxu0 0
    %183 = vmatprep.subr.bf16.mxu0 0
    %184 = vmatpush1.bf16.msra.mxu0 0
    %185 = vmatprep.subr.bf16.mxu0 0
    %186 = vmatpush1.bf16.msra.mxu0 0
    %187 = vmatprep.mubr.bf16.mxu0 0
    %188 = vmatmul.mubr.bf16.gmra.mrb[0].mxu0 %v91
    %v189 = vpop.f32.mrb[0].mxu0
    %v190 = vadd.f32 0.0, %v189
    %v191 = vpop.f32.mrb[0].mxu0
    %v192 = vpop.f32.mrb[0].mxu0
    %v193 = vadd.f32 0.0, %v192
    %v194 = vpop.f32.mrb[0].mxu0
    %195 = vmatprep.mubr.bf16.mxu0 0
    %196 = vmatmul.mubr.bf16.gmra.mrb[0].mxu0 %v92
    %v197 = vpop.f32.mrb[0].mxu0
    %v198 = vadd.f32 0.0, %v197
    %v199 = vpop.f32.mrb[0].mxu0
    %v200 = vpop.f32.mrb[0].mxu0
    %v201 = vadd.f32 0.0, %v200
    %v202 = vpop.f32.mrb[0].mxu0
    %203 = vmatprep.mubr.bf16.mxu0 0
    %204 = vmatmul.mubr.bf16.gmra.mrb[0].mxu0 %v93
    %v205 = vpop.f32.mrb[0].mxu0
    %v206 = vadd.f32 0.0, %v205
    %v207 = vpop.f32.mrb[0].mxu0
    %v208 = vpop.f32.mrb[0].mxu0
    %v209 = vadd.f32 0.0, %v208
    %v210 = vpop.f32.mrb[0].mxu0
    %211 = vmatprep.mubr.bf16.mxu0 0
    %212 = vmatmul.mubr.bf16.gmra.mrb[0].mxu0 %v94
    %v213 = vpop.f32.mrb[0].mxu0
    %v214 = vadd.f32 0.0, %v213
    %v215 = vpop.f32.mrb[0].mxu0
    %v216 = vpop.f32.mrb[0].mxu0
    %v217 = vadd.f32 0.0, %v216
    %v218 = vpop.f32.mrb[0].mxu0
    %219 = vmatprep.mubr.bf16.mxu0 0
    %220 = vmatmul.mubr.bf16.gmra.mrb[0].mxu0 %v95
    %v221 = vpop.f32.mrb[0].mxu0
    %v222 = vadd.f32 0.0, %v221
    %v223 = vpop.f32.mrb[0].mxu0
    %v224 = vpop.f32.mrb[0].mxu0
    %v225 = vadd.f32 0.0, %v224
    %v226 = vpop.f32.mrb[0].mxu0
    %227 = vmatprep.mubr.bf16.mxu0 0
    %228 = vmatmul.mubr.bf16.gmra.mrb[0].mxu0 %v96
    %v229 = vpop.f32.mrb[0].mxu0
    %v230 = vadd.f32 0.0, %v229
    %v231 = vpop.f32.mrb[0].mxu0
    %v232 = vpop.f32.mrb[0].mxu0
    %v233 = vadd.f32 0.0, %v232
    %v234 = vpop.f32.mrb[0].mxu0
    %235 = vmatprep.mubr.bf16.mxu0 0
    %236 = vmatmul.mubr.bf16.gmra.mrb[0].mxu0 %v97
    %v237 = vpop.f32.mrb[0].mxu0
    %v238 = vadd.f32 0.0, %v237
    %v239 = vpop.f32.mrb[0].mxu0
    %v240 = vpop.f32.mrb[0].mxu0
    %v241 = vadd.f32 0.0, %v240
    %v242 = vpop.f32.mrb[0].mxu0
    %243 = vmatprep.mubr.bf16.mxu0 0
    %244 = vmatmul.mubr.bf16.gmra.mrb[0].mxu0 %v98
    %v245 = vpop.f32.mrb[0].mxu0
    %v246 = vadd.f32 0.0, %v245
    %v247 = vpop.f32.mrb[0].mxu0
    %v248 = vpop.f32.mrb[0].mxu0
    %v249 = vadd.f32 0.0, %v248
    %v250 = vpop.f32.mrb[0].mxu0
    %251 = vdwg.mxu0
    %v252 = vmax.f32 %v190, 0.0
    %v253 = vmax.f32 %v193, 0.0
    %v254 = vmax.f32 %v198, 0.0
    %v255 = vmax.f32 %v201, 0.0
    %v256 = vmax.f32 %v206, 0.0
    %v257 = vmax.f32 %v209, 0.0
    %v258 = vmax.f32 %v214, 0.0
    %v259 = vmax.f32 %v217, 0.0
    %v260 = vmax.f32 %v222, 0.0
    %v261 = vmax.f32 %v225, 0.0
    %v262 = vmax.f32 %v230, 0.0
    %v263 = vmax.f32 %v233, 0.0
    %v264 = vmax.f32 %v238, 0.0
    %v265 = vmax.f32 %v241, 0.0
    %v266 = vmax.f32 %v246, 0.0
    %v267 = vmax.f32 %v249, 0.0
    %v268 = vpack.c.bf16 %v253, %v252
    %v269 = vpack.c.bf16 %v255, %v254
    %v270 = vpack.c.bf16 %v257, %v256
    %v271 = vpack.c.bf16 %v259, %v258
    %v272 = vpack.c.bf16 %v261, %v260
    %v273 = vpack.c.bf16 %v263, %v262
    %v274 = vpack.c.bf16 %v265, %v264
    %v275 = vpack.c.bf16 %v267, %v266
    %s276 = scalar_lea.vmem [#allocation2], 64
    %v277 = vld [vmem:[%s276] sm:$0xf]
    %v278 = vld [vmem:[%s276 + $0x4] sm:$0xf]
    %v279 = vld [vmem:[%s276 + $0x8] sm:$0xf]
    %v280 = vld [vmem:[%s276 + $0xc] sm:$0xf]
    %v281 = vld [vmem:[%s276 + $0x10] sm:$0xf]
    %v282 = vld [vmem:[%s276 + $0x14] sm:$0xf]
    %v283 = vld [vmem:[%s276 + $0x18] sm:$0xf]
    %v284 = vld [vmem:[%s276 + $0x1c] sm:$0xf]
    %v285 = vld [vmem:[%s276 + $0x20] sm:$0xf]
    %v286 = vld [vmem:[%s276 + $0x24] sm:$0xf]
    %v287 = vld [vmem:[%s276 + $0x28] sm:$0xf]
    %v288 = vld [vmem:[%s276 + $0x2c] sm:$0xf]
    %v289 = vld [vmem:[%s276 + $0x30] sm:$0xf]
    %v290 = vld [vmem:[%s276 + $0x34] sm:$0xf]
    %v291 = vld [vmem:[%s276 + $0x38] sm:$0xf]
    %v292 = vld [vmem:[%s276 + $0x3c] sm:$0xf]
    %v309 = vunpack.c.l.b16 %v277
    %v310 = vunpack.c.l.b16 %v278
    %v311 = vunpack.c.l.b16 %v279
    %v312 = vunpack.c.l.b16 %v280
    %v313 = vunpack.c.l.b16 %v281
    %v314 = vunpack.c.l.b16 %v282
    %v315 = vunpack.c.l.b16 %v283
    %v316 = vunpack.c.l.b16 %v284
    %v317 = vunpack.c.l.b16 %v285
    %v318 = vunpack.c.l.b16 %v286
    %v319 = vunpack.c.l.b16 %v287
    %v320 = vunpack.c.l.b16 %v288
    %v321 = vunpack.c.l.b16 %v289
    %v322 = vunpack.c.l.b16 %v290
    %v323 = vunpack.c.l.b16 %v291
    %v324 = vunpack.c.l.b16 %v292
    %v325 = vpack.c.b16 %v310, %v309
    %v326 = vpack.c.b16 %v312, %v311
    %v327 = vpack.c.b16 %v314, %v313
    %v328 = vpack.c.b16 %v316, %v315
    %v329 = vpack.c.b16 %v318, %v317
    %v330 = vpack.c.b16 %v320, %v319
    %v331 = vpack.c.b16 %v322, %v321
    %v332 = vpack.c.b16 %v324, %v323
    %341 = vmatprep.subr.bf16.mxu0 0
    %342 = vmatpush1.bf16.msra.mxu0 %v268
    %343 = vmatprep.subr.bf16.mxu0 0
    %344 = vmatpush1.bf16.msra.mxu0 %v269
    %345 = vmatprep.subr.bf16.mxu0 0
    %346 = vmatpush1.bf16.msra.mxu0 %v270
    %347 = vmatprep.subr.bf16.mxu0 0
    %348 = vmatpush1.bf16.msra.mxu0 %v271
    %349 = vmatprep.subr.bf16.mxu0 0
    %350 = vmatpush1.bf16.msra.mxu0 %v272
    %351 = vmatprep.subr.bf16.mxu0 0
    %352 = vmatpush1.bf16.msra.mxu0 %v273
    %353 = vmatprep.subr.bf16.mxu0 0
    %354 = vmatpush1.bf16.msra.mxu0 %v274
    %355 = vmatprep.subr.bf16.mxu0 0
    %356 = vmatpush1.bf16.msra.mxu0 %v275
    %357 = vmatprep.subr.bf16.mxu0 0
    %358 = vmatpush1.bf16.msra.mxu0 0
    %359 = vmatprep.subr.bf16.mxu0 0
    %360 = vmatpush1.bf16.msra.mxu0 0
    %361 = vmatprep.subr.bf16.mxu0 0
    %362 = vmatpush1.bf16.msra.mxu0 0
    %363 = vmatprep.subr.bf16.mxu0 0
    %364 = vmatpush1.bf16.msra.mxu0 0
    %365 = vmatprep.subr.bf16.mxu0 0
    %366 = vmatpush1.bf16.msra.mxu0 0
    %367 = vmatprep.subr.bf16.mxu0 0
    %368 = vmatpush1.bf16.msra.mxu0 0
    %369 = vmatprep.subr.bf16.mxu0 0
    %370 = vmatpush1.bf16.msra.mxu0 0
    %371 = vmatprep.subr.bf16.mxu0 0
    %372 = vmatpush1.bf16.msra.mxu0 0
    %373 = vmatprep.mubr.bf16.mxu0 0
    %374 = vmatmul.mubr.bf16.gmra.mrb[0].mxu0 %v325
    %v375 = vpop.f32.mrb[0].mxu0
    %v376 = vadd.f32 0.0, %v375
    %v377 = vpop.f32.mrb[0].mxu0
    %v378 = vpop.f32.mrb[0].mxu0
    %v379 = vadd.f32 0.0, %v378
    %v380 = vpop.f32.mrb[0].mxu0
    %381 = vmatprep.mubr.bf16.mxu0 0
    %382 = vmatmul.mubr.bf16.gmra.mrb[0].mxu0 %v326
    %v383 = vpop.f32.mrb[0].mxu0
    %v384 = vadd.f32 0.0, %v383
    %v385 = vpop.f32.mrb[0].mxu0
    %v386 = vpop.f32.mrb[0].mxu0
    %v387 = vadd.f32 0.0, %v386
    %v388 = vpop.f32.mrb[0].mxu0
    %389 = vmatprep.mubr.bf16.mxu0 0
    %390 = vmatmul.mubr.bf16.gmra.mrb[0].mxu0 %v327
    %v391 = vpop.f32.mrb[0].mxu0
    %v392 = vadd.f32 0.0, %v391
    %v393 = vpop.f32.mrb[0].mxu0
    %v394 = vpop.f32.mrb[0].mxu0
    %v395 = vadd.f32 0.0, %v394
    %v396 = vpop.f32.mrb[0].mxu0
    %397 = vmatprep.mubr.bf16.mxu0 0
    %398 = vmatmul.mubr.bf16.gmra.mrb[0].mxu0 %v328
    %v399 = vpop.f32.mrb[0].mxu0
    %v400 = vadd.f32 0.0, %v399
    %v401 = vpop.f32.mrb[0].mxu0
    %v402 = vpop.f32.mrb[0].mxu0
    %v403 = vadd.f32 0.0, %v402
    %v404 = vpop.f32.mrb[0].mxu0
    %405 = vmatprep.mubr.bf16.mxu0 0
    %406 = vmatmul.mubr.bf16.gmra.mrb[0].mxu0 %v329
    %v407 = vpop.f32.mrb[0].mxu0
    %v408 = vadd.f32 0.0, %v407
    %v409 = vpop.f32.mrb[0].mxu0
    %v410 = vpop.f32.mrb[0].mxu0
    %v411 = vadd.f32 0.0, %v410
    %v412 = vpop.f32.mrb[0].mxu0
    %413 = vmatprep.mubr.bf16.mxu0 0
    %414 = vmatmul.mubr.bf16.gmra.mrb[0].mxu0 %v330
    %v415 = vpop.f32.mrb[0].mxu0
    %v416 = vadd.f32 0.0, %v415
    %v417 = vpop.f32.mrb[0].mxu0
    %v418 = vpop.f32.mrb[0].mxu0
    %v419 = vadd.f32 0.0, %v418
    %v420 = vpop.f32.mrb[0].mxu0
    %421 = vmatprep.mubr.bf16.mxu0 0
    %422 = vmatmul.mubr.bf16.gmra.mrb[0].mxu0 %v331
    %v423 = vpop.f32.mrb[0].mxu0
    %v424 = vadd.f32 0.0, %v423
    %v425 = vpop.f32.mrb[0].mxu0
    %v426 = vpop.f32.mrb[0].mxu0
    %v427 = vadd.f32 0.0, %v426
    %v428 = vpop.f32.mrb[0].mxu0
    %429 = vmatprep.mubr.bf16.mxu0 0
    %430 = vmatmul.mubr.bf16.gmra.mrb[0].mxu0 %v332
    %v431 = vpop.f32.mrb[0].mxu0
    %v432 = vadd.f32 0.0, %v431
    %v433 = vpop.f32.mrb[0].mxu0
    %v434 = vpop.f32.mrb[0].mxu0
    %v435 = vadd.f32 0.0, %v434
    %v436 = vpop.f32.mrb[0].mxu0
    %437 = vdwg.mxu0
    %v438 = vmax.f32 %v376, 0.0
    %v439 = vmax.f32 %v379, 0.0
    %v440 = vmax.f32 %v384, 0.0
    %v441 = vmax.f32 %v387, 0.0
    %v442 = vmax.f32 %v392, 0.0
    %v443 = vmax.f32 %v395, 0.0
    %v444 = vmax.f32 %v400, 0.0
    %v445 = vmax.f32 %v403, 0.0
    %v446 = vmax.f32 %v408, 0.0
    %v447 = vmax.f32 %v411, 0.0
    %v448 = vmax.f32 %v416, 0.0
    %v449 = vmax.f32 %v419, 0.0
    %v450 = vmax.f32 %v424, 0.0
    %v451 = vmax.f32 %v427, 0.0
    %v452 = vmax.f32 %v432, 0.0
    %v453 = vmax.f32 %v435, 0.0
    %v454 = vpack.c.bf16 %v439, %v438
    %v455 = vpack.c.bf16 %v441, %v440
    %v456 = vpack.c.bf16 %v443, %v442
    %v457 = vpack.c.bf16 %v445, %v444
    %v458 = vpack.c.bf16 %v447, %v446
    %v459 = vpack.c.bf16 %v449, %v448
    %v460 = vpack.c.bf16 %v451, %v450
    %v461 = vpack.c.bf16 %v453, %v452
    %s462 = scalar_lea.vmem [#allocation2], 128
    %v463 = vld [vmem:[%s462] sm:$0xf]
    %v464 = vld [vmem:[%s462 + $0x4] sm:$0xf]
    %v465 = vld [vmem:[%s462 + $0x8] sm:$0xf]
    %v466 = vld [vmem:[%s462 + $0xc] sm:$0xf]
    %v467 = vld [vmem:[%s462 + $0x10] sm:$0xf]
    %v468 = vld [vmem:[%s462 + $0x14] sm:$0xf]
    %v469 = vld [vmem:[%s462 + $0x18] sm:$0xf]
    %v470 = vld [vmem:[%s462 + $0x1c] sm:$0xf]
    %v471 = vld [vmem:[%s462 + $0x20] sm:$0xf]
    %v472 = vld [vmem:[%s462 + $0x24] sm:$0xf]
    %v473 = vld [vmem:[%s462 + $0x28] sm:$0xf]
    %v474 = vld [vmem:[%s462 + $0x2c] sm:$0xf]
    %v475 = vld [vmem:[%s462 + $0x30] sm:$0xf]
    %v476 = vld [vmem:[%s462 + $0x34] sm:$0xf]
    %v477 = vld [vmem:[%s462 + $0x38] sm:$0xf]
    %v478 = vld [vmem:[%s462 + $0x3c] sm:$0xf]
    %v495 = vunpack.c.l.b16 %v463
    %v496 = vunpack.c.l.b16 %v464
    %v497 = vunpack.c.l.b16 %v465
    %v498 = vunpack.c.l.b16 %v466
    %v499 = vunpack.c.l.b16 %v467
    %v500 = vunpack.c.l.b16 %v468
    %v501 = vunpack.c.l.b16 %v469
    %v502 = vunpack.c.l.b16 %v470
    %v503 = vunpack.c.l.b16 %v471
    %v504 = vunpack.c.l.b16 %v472
    %v505 = vunpack.c.l.b16 %v473
    %v506 = vunpack.c.l.b16 %v474
    %v507 = vunpack.c.l.b16 %v475
    %v508 = vunpack.c.l.b16 %v476
    %v509 = vunpack.c.l.b16 %v477
    %v510 = vunpack.c.l.b16 %v478
    %v511 = vpack.c.b16 %v496, %v495
    %v512 = vpack.c.b16 %v498, %v497
    %v513 = vpack.c.b16 %v500, %v499
    %v514 = vpack.c.b16 %v502, %v501
    %v515 = vpack.c.b16 %v504, %v503
    %v516 = vpack.c.b16 %v506, %v505
    %v517 = vpack.c.b16 %v508, %v507
    %v518 = vpack.c.b16 %v510, %v509
    %527 = vmatprep.subr.bf16.mxu0 0
    %528 = vmatpush1.bf16.msra.mxu0 %v454
    %529 = vmatprep.subr.bf16.mxu0 0
    %530 = vmatpush1.bf16.msra.mxu0 %v455
    %531 = vmatprep.subr.bf16.mxu0 0
    %532 = vmatpush1.bf16.msra.mxu0 %v456
    %533 = vmatprep.subr.bf16.mxu0 0
    %534 = vmatpush1.bf16.msra.mxu0 %v457
    %535 = vmatprep.subr.bf16.mxu0 0
    %536 = vmatpush1.bf16.msra.mxu0 %v458
    %537 = vmatprep.subr.bf16.mxu0 0
    %538 = vmatpush1.bf16.msra.mxu0 %v459
    %539 = vmatprep.subr.bf16.mxu0 0
    %540 = vmatpush1.bf16.msra.mxu0 %v460
    %541 = vmatprep.subr.bf16.mxu0 0
    %542 = vmatpush1.bf16.msra.mxu0 %v461
    %543 = vmatprep.subr.bf16.mxu0 0
    %544 = vmatpush1.bf16.msra.mxu0 0
    %545 = vmatprep.subr.bf16.mxu0 0
    %546 = vmatpush1.bf16.msra.mxu0 0
    %547 = vmatprep.subr.bf16.mxu0 0
    %548 = vmatpush1.bf16.msra.mxu0 0
    %549 = vmatprep.subr.bf16.mxu0 0
    %550 = vmatpush1.bf16.msra.mxu0 0
    %551 = vmatprep.subr.bf16.mxu0 0
    %552 = vmatpush1.bf16.msra.mxu0 0
    %553 = vmatprep.subr.bf16.mxu0 0
    %554 = vmatpush1.bf16.msra.mxu0 0
    %555 = vmatprep.subr.bf16.mxu0 0
    %556 = vmatpush1.bf16.msra.mxu0 0
    %557 = vmatprep.subr.bf16.mxu0 0
    %558 = vmatpush1.bf16.msra.mxu0 0
    %559 = vmatprep.mubr.bf16.mxu0 0
    %560 = vmatmul.mubr.bf16.gmra.mrb[0].mxu0 %v511
    %v561 = vpop.f32.mrb[0].mxu0
    %v562 = vadd.f32 0.0, %v561
    %v563 = vpop.f32.mrb[0].mxu0
    %v564 = vpop.f32.mrb[0].mxu0
    %v565 = vadd.f32 0.0, %v564
    %v566 = vpop.f32.mrb[0].mxu0
    %567 = vmatprep.mubr.bf16.mxu0 0
    %568 = vmatmul.mubr.bf16.gmra.mrb[0].mxu0 %v512
    %v569 = vpop.f32.mrb[0].mxu0
    %v570 = vadd.f32 0.0, %v569
    %v571 = vpop.f32.mrb[0].mxu0
    %v572 = vpop.f32.mrb[0].mxu0
    %v573 = vadd.f32 0.0, %v572
    %v574 = vpop.f32.mrb[0].mxu0
    %575 = vmatprep.mubr.bf16.mxu0 0
    %576 = vmatmul.mubr.bf16.gmra.mrb[0].mxu0 %v513
    %v577 = vpop.f32.mrb[0].mxu0
    %v578 = vadd.f32 0.0, %v577
    %v579 = vpop.f32.mrb[0].mxu0
    %v580 = vpop.f32.mrb[0].mxu0
    %v581 = vadd.f32 0.0, %v580
    %v582 = vpop.f32.mrb[0].mxu0
    %583 = vmatprep.mubr.bf16.mxu0 0
    %584 = vmatmul.mubr.bf16.gmra.mrb[0].mxu0 %v514
    %v585 = vpop.f32.mrb[0].mxu0
    %v586 = vadd.f32 0.0, %v585
    %v587 = vpop.f32.mrb[0].mxu0
    %v588 = vpop.f32.mrb[0].mxu0
    %v589 = vadd.f32 0.0, %v588
    %v590 = vpop.f32.mrb[0].mxu0
    %591 = vmatprep.mubr.bf16.mxu0 0
    %592 = vmatmul.mubr.bf16.gmra.mrb[0].mxu0 %v515
    %v593 = vpop.f32.mrb[0].mxu0
    %v594 = vadd.f32 0.0, %v593
    %v595 = vpop.f32.mrb[0].mxu0
    %v596 = vpop.f32.mrb[0].mxu0
    %v597 = vadd.f32 0.0, %v596
    %v598 = vpop.f32.mrb[0].mxu0
    %599 = vmatprep.mubr.bf16.mxu0 0
    %600 = vmatmul.mubr.bf16.gmra.mrb[0].mxu0 %v516
    %v601 = vpop.f32.mrb[0].mxu0
    %v602 = vadd.f32 0.0, %v601
    %v603 = vpop.f32.mrb[0].mxu0
    %v604 = vpop.f32.mrb[0].mxu0
    %v605 = vadd.f32 0.0, %v604
    %v606 = vpop.f32.mrb[0].mxu0
    %607 = vmatprep.mubr.bf16.mxu0 0
    %608 = vmatmul.mubr.bf16.gmra.mrb[0].mxu0 %v517
    %v609 = vpop.f32.mrb[0].mxu0
    %v610 = vadd.f32 0.0, %v609
    %v611 = vpop.f32.mrb[0].mxu0
    %v612 = vpop.f32.mrb[0].mxu0
    %v613 = vadd.f32 0.0, %v612
    %v614 = vpop.f32.mrb[0].mxu0
    %615 = vmatprep.mubr.bf16.mxu0 0
    %616 = vmatmul.mubr.bf16.gmra.mrb[0].mxu0 %v518
    %v617 = vpop.f32.mrb[0].mxu0
    %v618 = vadd.f32 0.0, %v617
    %v619 = vpop.f32.mrb[0].mxu0
    %v620 = vpop.f32.mrb[0].mxu0
    %v621 = vadd.f32 0.0, %v620
    %v622 = vpop.f32.mrb[0].mxu0
    %623 = vdwg.mxu0
    %v624 = vmax.f32 %v562, 0.0
    %v625 = vmax.f32 %v565, 0.0
    %v626 = vmax.f32 %v570, 0.0
    %v627 = vmax.f32 %v573, 0.0
    %v628 = vmax.f32 %v578, 0.0
    %v629 = vmax.f32 %v581, 0.0
    %v630 = vmax.f32 %v586, 0.0
    %v631 = vmax.f32 %v589, 0.0
    %v632 = vmax.f32 %v594, 0.0
    %v633 = vmax.f32 %v597, 0.0
    %v634 = vmax.f32 %v602, 0.0
    %v635 = vmax.f32 %v605, 0.0
    %v636 = vmax.f32 %v610, 0.0
    %v637 = vmax.f32 %v613, 0.0
    %v638 = vmax.f32 %v618, 0.0
    %v639 = vmax.f32 %v621, 0.0
    %v640 = vpack.c.bf16 %v625, %v624
    %v641 = vpack.c.bf16 %v627, %v626
    %v642 = vpack.c.bf16 %v629, %v628
    %v643 = vpack.c.bf16 %v631, %v630
    %v644 = vpack.c.bf16 %v633, %v632
    %v645 = vpack.c.bf16 %v635, %v634
    %v646 = vpack.c.bf16 %v637, %v636
    %v647 = vpack.c.bf16 %v639, %v638
    %s648 = scalar_lea.vmem [#allocation2], 192
    %v649 = vld [vmem:[%s648] sm:$0xf]
    %v650 = vld [vmem:[%s648 + $0x4] sm:$0xf]
    %v651 = vld [vmem:[%s648 + $0x8] sm:$0xf]
    %v652 = vld [vmem:[%s648 + $0xc] sm:$0xf]
    %v653 = vld [vmem:[%s648 + $0x10] sm:$0xf]
    %v654 = vld [vmem:[%s648 + $0x14] sm:$0xf]
    %v655 = vld [vmem:[%s648 + $0x18] sm:$0xf]
    %v656 = vld [vmem:[%s648 + $0x1c] sm:$0xf]
    %v657 = vld [vmem:[%s648 + $0x20] sm:$0xf]
    %v658 = vld [vmem:[%s648 + $0x24] sm:$0xf]
    %v659 = vld [vmem:[%s648 + $0x28] sm:$0xf]
    %v660 = vld [vmem:[%s648 + $0x2c] sm:$0xf]
    %v661 = vld [vmem:[%s648 + $0x30] sm:$0xf]
    %v662 = vld [vmem:[%s648 + $0x34] sm:$0xf]
    %v663 = vld [vmem:[%s648 + $0x38] sm:$0xf]
    %v664 = vld [vmem:[%s648 + $0x3c] sm:$0xf]
    %v681 = vunpack.c.l.b16 %v649
    %v682 = vunpack.c.l.b16 %v650
    %v683 = vunpack.c.l.b16 %v651
    %v684 = vunpack.c.l.b16 %v652
    %v685 = vunpack.c.l.b16 %v653
    %v686 = vunpack.c.l.b16 %v654
    %v687 = vunpack.c.l.b16 %v655
    %v688 = vunpack.c.l.b16 %v656
    %v689 = vunpack.c.l.b16 %v657
    %v690 = vunpack.c.l.b16 %v658
    %v691 = vunpack.c.l.b16 %v659
    %v692 = vunpack.c.l.b16 %v660
    %v693 = vunpack.c.l.b16 %v661
    %v694 = vunpack.c.l.b16 %v662
    %v695 = vunpack.c.l.b16 %v663
    %v696 = vunpack.c.l.b16 %v664
    %v697 = vpack.c.b16 %v682, %v681
    %v698 = vpack.c.b16 %v684, %v683
    %v699 = vpack.c.b16 %v686, %v685
    %v700 = vpack.c.b16 %v688, %v687
    %v701 = vpack.c.b16 %v690, %v689
    %v702 = vpack.c.b16 %v692, %v691
    %v703 = vpack.c.b16 %v694, %v693
    %v704 = vpack.c.b16 %v696, %v695
    %713 = vmatprep.subr.bf16.mxu0 0
    %714 = vmatpush1.bf16.msra.mxu0 %v640
    %715 = vmatprep.subr.bf16.mxu0 0
    %716 = vmatpush1.bf16.msra.mxu0 %v641
    %717 = vmatprep.subr.bf16.mxu0 0
    %718 = vmatpush1.bf16.msra.mxu0 %v642
    %719 = vmatprep.subr.bf16.mxu0 0
    %720 = vmatpush1.bf16.msra.mxu0 %v643
    %721 = vmatprep.subr.bf16.mxu0 0
    %722 = vmatpush1.bf16.msra.mxu0 %v644
    %723 = vmatprep.subr.bf16.mxu0 0
    %724 = vmatpush1.bf16.msra.mxu0 %v645
    %725 = vmatprep.subr.bf16.mxu0 0
    %726 = vmatpush1.bf16.msra.mxu0 %v646
    %727 = vmatprep.subr.bf16.mxu0 0
    %728 = vmatpush1.bf16.msra.mxu0 %v647
    %729 = vmatprep.subr.bf16.mxu0 0
    %730 = vmatpush1.bf16.msra.mxu0 0
    %731 = vmatprep.subr.bf16.mxu0 0
    %732 = vmatpush1.bf16.msra.mxu0 0
    %733 = vmatprep.subr.bf16.mxu0 0
    %734 = vmatpush1.bf16.msra.mxu0 0
    %735 = vmatprep.subr.bf16.mxu0 0
    %736 = vmatpush1.bf16.msra.mxu0 0
    %737 = vmatprep.subr.bf16.mxu0 0
    %738 = vmatpush1.bf16.msra.mxu0 0
    %739 = vmatprep.subr.bf16.mxu0 0
    %740 = vmatpush1.bf16.msra.mxu0 0
    %741 = vmatprep.subr.bf16.mxu0 0
    %742 = vmatpush1.bf16.msra.mxu0 0
    %743 = vmatprep.subr.bf16.mxu0 0
    %744 = vmatpush1.bf16.msra.mxu0 0
    %745 = vmatprep.mubr.bf16.mxu0 0
    %746 = vmatmul.mubr.bf16.gmra.mrb[0].mxu0 %v697
    %v747 = vpop.f32.mrb[0].mxu0
    %v748 = vadd.f32 0.0, %v747
    %v749 = vpop.f32.mrb[0].mxu0
    %v750 = vpop.f32.mrb[0].mxu0
    %v751 = vadd.f32 0.0, %v750
    %v752 = vpop.f32.mrb[0].mxu0
    %753 = vmatprep.mubr.bf16.mxu0 0
    %754 = vmatmul.mubr.bf16.gmra.mrb[0].mxu0 %v698
    %v755 = vpop.f32.mrb[0].mxu0
    %v756 = vadd.f32 0.0, %v755
    %v757 = vpop.f32.mrb[0].mxu0
    %v758 = vpop.f32.mrb[0].mxu0
    %v759 = vadd.f32 0.0, %v758
    %v760 = vpop.f32.mrb[0].mxu0
    %761 = vmatprep.mubr.bf16.mxu0 0
    %762 = vmatmul.mubr.bf16.gmra.mrb[0].mxu0 %v699
    %v763 = vpop.f32.mrb[0].mxu0
    %v764 = vadd.f32 0.0, %v763
    %v765 = vpop.f32.mrb[0].mxu0
    %v766 = vpop.f32.mrb[0].mxu0
    %v767 = vadd.f32 0.0, %v766
    %v768 = vpop.f32.mrb[0].mxu0
    %769 = vmatprep.mubr.bf16.mxu0 0
    %770 = vmatmul.mubr.bf16.gmra.mrb[0].mxu0 %v700
    %v771 = vpop.f32.mrb[0].mxu0
    %v772 = vadd.f32 0.0, %v771
    %v773 = vpop.f32.mrb[0].mxu0
    %v774 = vpop.f32.mrb[0].mxu0
    %v775 = vadd.f32 0.0, %v774
    %v776 = vpop.f32.mrb[0].mxu0
    %777 = vmatprep.mubr.bf16.mxu0 0
    %778 = vmatmul.mubr.bf16.gmra.mrb[0].mxu0 %v701
    %v779 = vpop.f32.mrb[0].mxu0
    %v780 = vadd.f32 0.0, %v779
    %v781 = vpop.f32.mrb[0].mxu0
    %v782 = vpop.f32.mrb[0].mxu0
    %v783 = vadd.f32 0.0, %v782
    %v784 = vpop.f32.mrb[0].mxu0
    %785 = vmatprep.mubr.bf16.mxu0 0
    %786 = vmatmul.mubr.bf16.gmra.mrb[0].mxu0 %v702
    %v787 = vpop.f32.mrb[0].mxu0
    %v788 = vadd.f32 0.0, %v787
    %v789 = vpop.f32.mrb[0].mxu0
    %v790 = vpop.f32.mrb[0].mxu0
    %v791 = vadd.f32 0.0, %v790
    %v792 = vpop.f32.mrb[0].mxu0
    %793 = vmatprep.mubr.bf16.mxu0 0
    %794 = vmatmul.mubr.bf16.gmra.mrb[0].mxu0 %v703
    %v795 = vpop.f32.mrb[0].mxu0
    %v796 = vadd.f32 0.0, %v795
    %v797 = vpop.f32.mrb[0].mxu0
    %v798 = vpop.f32.mrb[0].mxu0
    %v799 = vadd.f32 0.0, %v798
    %v800 = vpop.f32.mrb[0].mxu0
    %801 = vmatprep.mubr.bf16.mxu0 0
    %802 = vmatmul.mubr.bf16.gmra.mrb[0].mxu0 %v704
    %v803 = vpop.f32.mrb[0].mxu0
    %v804 = vadd.f32 0.0, %v803
    %v805 = vpop.f32.mrb[0].mxu0
    %v806 = vpop.f32.mrb[0].mxu0
    %v807 = vadd.f32 0.0, %v806
    %v808 = vpop.f32.mrb[0].mxu0
    %809 = vdwg.mxu0
    %v810 = vmax.f32 %v748, 0.0
    %v811 = vmax.f32 %v751, 0.0
    %v812 = vmax.f32 %v756, 0.0
    %v813 = vmax.f32 %v759, 0.0
    %v814 = vmax.f32 %v764, 0.0
    %v815 = vmax.f32 %v767, 0.0
    %v816 = vmax.f32 %v772, 0.0
    %v817 = vmax.f32 %v775, 0.0
    %v818 = vmax.f32 %v780, 0.0
    %v819 = vmax.f32 %v783, 0.0
    %v820 = vmax.f32 %v788, 0.0
    %v821 = vmax.f32 %v791, 0.0
    %v822 = vmax.f32 %v796, 0.0
    %v823 = vmax.f32 %v799, 0.0
    %v824 = vmax.f32 %v804, 0.0
    %v825 = vmax.f32 %v807, 0.0
    %v826 = vpack.c.bf16 %v811, %v810
    %v827 = vpack.c.bf16 %v813, %v812
    %v828 = vpack.c.bf16 %v815, %v814
    %v829 = vpack.c.bf16 %v817, %v816
    %v830 = vpack.c.bf16 %v819, %v818
    %v831 = vpack.c.bf16 %v821, %v820
    %v832 = vpack.c.bf16 %v823, %v822
    %v833 = vpack.c.bf16 %v825, %v824
    %s834 = scalar_lea.vmem [#allocation2], 256
    %v835 = vld [vmem:[%s834] sm:$0xf]
    %v836 = vld [vmem:[%s834 + $0x4] sm:$0xf]
    %v837 = vld [vmem:[%s834 + $0x8] sm:$0xf]
    %v838 = vld [vmem:[%s834 + $0xc] sm:$0xf]
    %v839 = vld [vmem:[%s834 + $0x10] sm:$0xf]
    %v840 = vld [vmem:[%s834 + $0x14] sm:$0xf]
    %v841 = vld [vmem:[%s834 + $0x18] sm:$0xf]
    %v842 = vld [vmem:[%s834 + $0x1c] sm:$0xf]
    %v843 = vld [vmem:[%s834 + $0x20] sm:$0xf]
    %v844 = vld [vmem:[%s834 + $0x24] sm:$0xf]
    %v845 = vld [vmem:[%s834 + $0x28] sm:$0xf]
    %v846 = vld [vmem:[%s834 + $0x2c] sm:$0xf]
    %v847 = vld [vmem:[%s834 + $0x30] sm:$0xf]
    %v848 = vld [vmem:[%s834 + $0x34] sm:$0xf]
    %v849 = vld [vmem:[%s834 + $0x38] sm:$0xf]
    %v850 = vld [vmem:[%s834 + $0x3c] sm:$0xf]
    %v867 = vunpack.c.l.b16 %v835
    %v868 = vunpack.c.l.b16 %v836
    %v869 = vunpack.c.l.b16 %v837
    %v870 = vunpack.c.l.b16 %v838
    %v871 = vunpack.c.l.b16 %v839
    %v872 = vunpack.c.l.b16 %v840
    %v873 = vunpack.c.l.b16 %v841
    %v874 = vunpack.c.l.b16 %v842
    %v875 = vunpack.c.l.b16 %v843
    %v876 = vunpack.c.l.b16 %v844
    %v877 = vunpack.c.l.b16 %v845
    %v878 = vunpack.c.l.b16 %v846
    %v879 = vunpack.c.l.b16 %v847
    %v880 = vunpack.c.l.b16 %v848
    %v881 = vunpack.c.l.b16 %v849
    %v882 = vunpack.c.l.b16 %v850
    %v883 = vpack.c.b16 %v868, %v867
    %v884 = vpack.c.b16 %v870, %v869
    %v885 = vpack.c.b16 %v872, %v871
    %v886 = vpack.c.b16 %v874, %v873
    %v887 = vpack.c.b16 %v876, %v875
    %v888 = vpack.c.b16 %v878, %v877
    %v889 = vpack.c.b16 %v880, %v879
    %v890 = vpack.c.b16 %v882, %v881
    %899 = vmatprep.subr.bf16.mxu0 0
    %900 = vmatpush1.bf16.msra.mxu0 %v826
    %901 = vmatprep.subr.bf16.mxu0 0
    %902 = vmatpush1.bf16.msra.mxu0 %v827
    %903 = vmatprep.subr.bf16.mxu0 0
    %904 = vmatpush1.bf16.msra.mxu0 %v828
    %905 = vmatprep.subr.bf16.mxu0 0
    %906 = vmatpush1.bf16.msra.mxu0 %v829
    %907 = vmatprep.subr.bf16.mxu0 0
    %908 = vmatpush1.bf16.msra.mxu0 %v830
    %909 = vmatprep.subr.bf16.mxu0 0
    %910 = vmatpush1.bf16.msra.mxu0 %v831
    %911 = vmatprep.subr.bf16.mxu0 0
    %912 = vmatpush1.bf16.msra.mxu0 %v832
    %913 = vmatprep.subr.bf16.mxu0 0
    %914 = vmatpush1.bf16.msra.mxu0 %v833
    %915 = vmatprep.subr.bf16.mxu0 0
    %916 = vmatpush1.bf16.msra.mxu0 0
    %917 = vmatprep.subr.bf16.mxu0 0
    %918 = vmatpush1.bf16.msra.mxu0 0
    %919 = vmatprep.subr.bf16.mxu0 0
    %920 = vmatpush1.bf16.msra.mxu0 0
    %921 = vmatprep.subr.bf16.mxu0 0
    %922 = vmatpush1.bf16.msra.mxu0 0
    %923 = vmatprep.subr.bf16.mxu0 0
    %924 = vmatpush1.bf16.msra.mxu0 0
    %925 = vmatprep.subr.bf16.mxu0 0
    %926 = vmatpush1.bf16.msra.mxu0 0
    %927 = vmatprep.subr.bf16.mxu0 0
    %928 = vmatpush1.bf16.msra.mxu0 0
    %929 = vmatprep.subr.bf16.mxu0 0
    %930 = vmatpush1.bf16.msra.mxu0 0
    %931 = vmatprep.mubr.bf16.mxu0 0
    %932 = vmatmul.mubr.bf16.gmra.mrb[0].mxu0 %v883
    %v933 = vpop.f32.mrb[0].mxu0
    %v934 = vadd.f32 0.0, %v933
    %v935 = vpop.f32.mrb[0].mxu0
    %v936 = vpop.f32.mrb[0].mxu0
    %v937 = vadd.f32 0.0, %v936
    %v938 = vpop.f32.mrb[0].mxu0
    %939 = vmatprep.mubr.bf16.mxu0 0
    %940 = vmatmul.mubr.bf16.gmra.mrb[0].mxu0 %v884
    %v941 = vpop.f32.mrb[0].mxu0
    %v942 = vadd.f32 0.0, %v941
    %v943 = vpop.f32.mrb[0].mxu0
    %v944 = vpop.f32.mrb[0].mxu0
    %v945 = vadd.f32 0.0, %v944
    %v946 = vpop.f32.mrb[0].mxu0
    %947 = vmatprep.mubr.bf16.mxu0 0
    %948 = vmatmul.mubr.bf16.gmra.mrb[0].mxu0 %v885
    %v949 = vpop.f32.mrb[0].mxu0
    %v950 = vadd.f32 0.0, %v949
    %v951 = vpop.f32.mrb[0].mxu0
    %v952 = vpop.f32.mrb[0].mxu0
    %v953 = vadd.f32 0.0, %v952
    %v954 = vpop.f32.mrb[0].mxu0
    %955 = vmatprep.mubr.bf16.mxu0 0
    %956 = vmatmul.mubr.bf16.gmra.mrb[0].mxu0 %v886
    %v957 = vpop.f32.mrb[0].mxu0
    %v958 = vadd.f32 0.0, %v957
    %v959 = vpop.f32.mrb[0].mxu0
    %v960 = vpop.f32.mrb[0].mxu0
    %v961 = vadd.f32 0.0, %v960
    %v962 = vpop.f32.mrb[0].mxu0
    %963 = vmatprep.mubr.bf16.mxu0 0
    %964 = vmatmul.mubr.bf16.gmra.mrb[0].mxu0 %v887
    %v965 = vpop.f32.mrb[0].mxu0
    %v966 = vadd.f32 0.0, %v965
    %v967 = vpop.f32.mrb[0].mxu0
    %v968 = vpop.f32.mrb[0].mxu0
    %v969 = vadd.f32 0.0, %v968
    %v970 = vpop.f32.mrb[0].mxu0
    %971 = vmatprep.mubr.bf16.mxu0 0
    %972 = vmatmul.mubr.bf16.gmra.mrb[0].mxu0 %v888
    %v973 = vpop.f32.mrb[0].mxu0
    %v974 = vadd.f32 0.0, %v973
    %v975 = vpop.f32.mrb[0].mxu0
    %v976 = vpop.f32.mrb[0].mxu0
    %v977 = vadd.f32 0.0, %v976
    %v978 = vpop.f32.mrb[0].mxu0
    %979 = vmatprep.mubr.bf16.mxu0 0
    %980 = vmatmul.mubr.bf16.gmra.mrb[0].mxu0 %v889
    %v981 = vpop.f32.mrb[0].mxu0
    %v982 = vadd.f32 0.0, %v981
    %v983 = vpop.f32.mrb[0].mxu0
    %v984 = vpop.f32.mrb[0].mxu0
    %v985 = vadd.f32 0.0, %v984
    %v986 = vpop.f32.mrb[0].mxu0
    %987 = vmatprep.mubr.bf16.mxu0 0
    %988 = vmatmul.mubr.bf16.gmra.mrb[0].mxu0 %v890
    %v989 = vpop.f32.mrb[0].mxu0
    %v990 = vadd.f32 0.0, %v989
    %v991 = vpop.f32.mrb[0].mxu0
    %v992 = vpop.f32.mrb[0].mxu0
    %v993 = vadd.f32 0.0, %v992
    %v994 = vpop.f32.mrb[0].mxu0
    %995 = vdwg.mxu0
    %v996 = vmax.f32 %v934, 0.0
    %v997 = vmax.f32 %v937, 0.0
    %v998 = vmax.f32 %v942, 0.0
    %v999 = vmax.f32 %v945, 0.0
    %v1000 = vmax.f32 %v950, 0.0
    %v1001 = vmax.f32 %v953, 0.0
    %v1002 = vmax.f32 %v958, 0.0
    %v1003 = vmax.f32 %v961, 0.0
    %v1004 = vmax.f32 %v966, 0.0
    %v1005 = vmax.f32 %v969, 0.0
    %v1006 = vmax.f32 %v974, 0.0
    %v1007 = vmax.f32 %v977, 0.0
    %v1008 = vmax.f32 %v982, 0.0
    %v1009 = vmax.f32 %v985, 0.0
    %v1010 = vmax.f32 %v990, 0.0
    %v1011 = vmax.f32 %v993, 0.0
    %v1012 = vpack.c.bf16 %v997, %v996
    %v1013 = vpack.c.bf16 %v999, %v998
    %v1014 = vpack.c.bf16 %v1001, %v1000
    %v1015 = vpack.c.bf16 %v1003, %v1002
    %v1016 = vpack.c.bf16 %v1005, %v1004
    %v1017 = vpack.c.bf16 %v1007, %v1006
    %v1018 = vpack.c.bf16 %v1009, %v1008
    %v1019 = vpack.c.bf16 %v1011, %v1010
    %s1020 = scalar_lea.vmem [#allocation2], 320
    %v1021 = vld [vmem:[%s1020] sm:$0xf]
    %v1022 = vld [vmem:[%s1020 + $0x4] sm:$0xf]
    %v1023 = vld [vmem:[%s1020 + $0x8] sm:$0xf]
    %v1024 = vld [vmem:[%s1020 + $0xc] sm:$0xf]
    %v1025 = vld [vmem:[%s1020 + $0x10] sm:$0xf]
    %v1026 = vld [vmem:[%s1020 + $0x14] sm:$0xf]
    %v1027 = vld [vmem:[%s1020 + $0x18] sm:$0xf]
    %v1028 = vld [vmem:[%s1020 + $0x1c] sm:$0xf]
    %v1029 = vld [vmem:[%s1020 + $0x20] sm:$0xf]
    %v1030 = vld [vmem:[%s1020 + $0x24] sm:$0xf]
    %v1031 = vld [vmem:[%s1020 + $0x28] sm:$0xf]
    %v1032 = vld [vmem:[%s1020 + $0x2c] sm:$0xf]
    %v1033 = vld [vmem:[%s1020 + $0x30] sm:$0xf]
    %v1034 = vld [vmem:[%s1020 + $0x34] sm:$0xf]
    %v1035 = vld [vmem:[%s1020 + $0x38] sm:$0xf]
    %v1036 = vld [vmem:[%s1020 + $0x3c] sm:$0xf]
    %v1053 = vunpack.c.l.b16 %v1021
    %v1054 = vunpack.c.l.b16 %v1022
    %v1055 = vunpack.c.l.b16 %v1023
    %v1056 = vunpack.c.l.b16 %v1024
    %v1057 = vunpack.c.l.b16 %v1025
    %v1058 = vunpack.c.l.b16 %v1026
    %v1059 = vunpack.c.l.b16 %v1027
    %v1060 = vunpack.c.l.b16 %v1028
    %v1061 = vunpack.c.l.b16 %v1029
    %v1062 = vunpack.c.l.b16 %v1030
    %v1063 = vunpack.c.l.b16 %v1031
    %v1064 = vunpack.c.l.b16 %v1032
    %v1065 = vunpack.c.l.b16 %v1033
    %v1066 = vunpack.c.l.b16 %v1034
    %v1067 = vunpack.c.l.b16 %v1035
    %v1068 = vunpack.c.l.b16 %v1036
    %v1069 = vpack.c.b16 %v1054, %v1053
    %v1070 = vpack.c.b16 %v1056, %v1055
    %v1071 = vpack.c.b16 %v1058, %v1057
    %v1072 = vpack.c.b16 %v1060, %v1059
    %v1073 = vpack.c.b16 %v1062, %v1061
    %v1074 = vpack.c.b16 %v1064, %v1063
    %v1075 = vpack.c.b16 %v1066, %v1065
    %v1076 = vpack.c.b16 %v1068, %v1067
    %1085 = vmatprep.subr.bf16.mxu0 0
    %1086 = vmatpush1.bf16.msra.mxu0 %v1012
    %1087 = vmatprep.subr.bf16.mxu0 0
    %1088 = vmatpush1.bf16.msra.mxu0 %v1013
    %1089 = vmatprep.subr.bf16.mxu0 0
    %1090 = vmatpush1.bf16.msra.mxu0 %v1014
    %1091 = vmatprep.subr.bf16.mxu0 0
    %1092 = vmatpush1.bf16.msra.mxu0 %v1015
    %1093 = vmatprep.subr.bf16.mxu0 0
    %1094 = vmatpush1.bf16.msra.mxu0 %v1016
    %1095 = vmatprep.subr.bf16.mxu0 0
    %1096 = vmatpush1.bf16.msra.mxu0 %v1017
    %1097 = vmatprep.subr.bf16.mxu0 0
    %1098 = vmatpush1.bf16.msra.mxu0 %v1018
    %1099 = vmatprep.subr.bf16.mxu0 0
    %1100 = vmatpush1.bf16.msra.mxu0 %v1019
    %1101 = vmatprep.subr.bf16.mxu0 0
    %1102 = vmatpush1.bf16.msra.mxu0 0
    %1103 = vmatprep.subr.bf16.mxu0 0
    %1104 = vmatpush1.bf16.msra.mxu0 0
    %1105 = vmatprep.subr.bf16.mxu0 0
    %1106 = vmatpush1.bf16.msra.mxu0 0
    %1107 = vmatprep.subr.bf16.mxu0 0
    %1108 = vmatpush1.bf16.msra.mxu0 0
    %1109 = vmatprep.subr.bf16.mxu0 0
    %1110 = vmatpush1.bf16.msra.mxu0 0
    %1111 = vmatprep.subr.bf16.mxu0 0
    %1112 = vmatpush1.bf16.msra.mxu0 0
    %1113 = vmatprep.subr.bf16.mxu0 0
    %1114 = vmatpush1.bf16.msra.mxu0 0
    %1115 = vmatprep.subr.bf16.mxu0 0
    %1116 = vmatpush1.bf16.msra.mxu0 0
    %1117 = vmatprep.mubr.bf16.mxu0 0
    %1118 = vmatmul.mubr.bf16.gmra.mrb[0].mxu0 %v1069
    %v1119 = vpop.f32.mrb[0].mxu0
    %v1120 = vadd.f32 0.0, %v1119
    %v1121 = vpop.f32.mrb[0].mxu0
    %v1122 = vpop.f32.mrb[0].mxu0
    %v1123 = vpop.f32.mrb[0].mxu0
    %1124 = vmatprep.mubr.bf16.mxu0 0
    %1125 = vmatmul.mubr.bf16.gmra.mrb[0].mxu0 %v1070
    %v1126 = vpop.f32.mrb[0].mxu0
    %v1127 = vpop.f32.mrb[0].mxu0
    %v1128 = vpop.f32.mrb[0].mxu0
    %v1129 = vpop.f32.mrb[0].mxu0
    %1130 = vmatprep.mubr.bf16.mxu0 0
    %1131 = vmatmul.mubr.bf16.gmra.mrb[0].mxu0 %v1071
    %v1132 = vpop.f32.mrb[0].mxu0
    %v1133 = vpop.f32.mrb[0].mxu0
    %v1134 = vpop.f32.mrb[0].mxu0
    %v1135 = vpop.f32.mrb[0].mxu0
    %1136 = vmatprep.mubr.bf16.mxu0 0
    %1137 = vmatmul.mubr.bf16.gmra.mrb[0].mxu0 %v1072
    %v1138 = vpop.f32.mrb[0].mxu0
    %v1139 = vpop.f32.mrb[0].mxu0
    %v1140 = vpop.f32.mrb[0].mxu0
    %v1141 = vpop.f32.mrb[0].mxu0
    %1142 = vmatprep.mubr.bf16.mxu0 0
    %1143 = vmatmul.mubr.bf16.gmra.mrb[0].mxu0 %v1073
    %v1144 = vpop.f32.mrb[0].mxu0
    %v1145 = vpop.f32.mrb[0].mxu0
    %v1146 = vpop.f32.mrb[0].mxu0
    %v1147 = vpop.f32.mrb[0].mxu0
    %1148 = vmatprep.mubr.bf16.mxu0 0
    %1149 = vmatmul.mubr.bf16.gmra.mrb[0].mxu0 %v1074
    %v1150 = vpop.f32.mrb[0].mxu0
    %v1151 = vpop.f32.mrb[0].mxu0
    %v1152 = vpop.f32.mrb[0].mxu0
    %v1153 = vpop.f32.mrb[0].mxu0
    %1154 = vmatprep.mubr.bf16.mxu0 0
    %1155 = vmatmul.mubr.bf16.gmra.mrb[0].mxu0 %v1075
    %v1156 = vpop.f32.mrb[0].mxu0
    %v1157 = vpop.f32.mrb[0].mxu0
    %v1158 = vpop.f32.mrb[0].mxu0
    %v1159 = vpop.f32.mrb[0].mxu0
    %1160 = vmatprep.mubr.bf16.mxu0 0
    %1161 = vmatmul.mubr.bf16.gmra.mrb[0].mxu0 %v1076
    %v1162 = vpop.f32.mrb[0].mxu0
    %v1163 = vpop.f32.mrb[0].mxu0
    %v1164 = vpop.f32.mrb[0].mxu0
    %v1165 = vpop.f32.mrb[0].mxu0
    %1166 = vdwg.mxu0
    %1167 = vst [vmem:[#allocation5] sm:$0x1] %v1120
    // Predicated region
    $region14: #{_q_controller_mlp_tiled.1} parent=1 // pred_check
      _
    $region15: #{_q_controller_mlp_tiled.1} parent=1 // pred_check_branch
      %1169 = sbr.rel (0) target = $region17
    $region16: #{_q_controller_mlp_tiled.1} parent=1 // pred_region
      %s1171 = ssub.s32 16, 16
      %1172 = vsyncadd [#allocation4], %s1171
      %s1174 = sshll.u32 [#allocation5], 4
      %s1175 = int_to_ptr.vmem [resolvable:$true] %s1174
      %1177 = dma.vmem_to_hbm [thread:$0]  %s1175, 16, %s2, [#allocation4]
    $region17: #{_q_controller_mlp_tiled.1} parent=1 // pred_fallthru
      _
    // Predicated region
    $region18: #{_q_controller_mlp_tiled.1} parent=1 // pred_check
      _
    $region19: #{_q_controller_mlp_tiled.1} parent=1 // pred_check_branch
      %1179 = sbr.rel (0) target = $region21
    $region20: #{_q_controller_mlp_tiled.1} parent=1 // pred_region
      %1180 = dma.done [#allocation4], 16
    $region21: #{_q_controller_mlp_tiled.1} parent=1 // pred_fallthru
      _
    %1181 = vsyncpa [#allocation3], 1
    %1182 = vsyncpa [#allocation4], 1

</llo_original>
